<compile_context>
chip_gen: v5e
topology: v5e:2x2
jax: 0.10.0
libtpu: 0.0.40
codegen_flags: <defaults>
</compile_context>

<pallas_src>
import math

import jax
import jax.numpy as jnp
from jax.experimental import pallas as pl
from jax.experimental.pallas import tpu as pltpu

pi = 0.01

_H1 = 100            # logical hidden sizes (PyTorch module)
_H2 = 50
_H1_PAD = 128        # lane-padded hidden sizes (zero padding, numerically inert)
_H2_PAD = 128
_LANE = 128
_SUBLANE_BF16 = 16   # bf16 vregs pack [16, 128]


def _round_up(x, m):
    return ((x + m - 1) // m) * m


def _mlp_kernel(idx_ref, m1_ref, b1_ref, w2_ref, b2_ref, w3_ref, b3_ref, o_ref):
    """Fused embedding gather + 3-layer MLP for one batch tile.

    idx_ref : [TB, P]            int32 item indices
    m1_ref  : [P*n_items, 128]   f32  fused (embedding @ W1t) blocks stacked over p
    b1_ref  : [1, 128] f32   w2_ref: [128, 128] bf16   b2_ref: [1, 128] f32
    w3_ref  : [128, out_pad] bf16                      b3_ref: [1, out_pad] f32
    o_ref   : [TB, out_pad] f32
    """
    idx = idx_ref[...]                               # [TB, P] int32
    tb, p_obs = idx.shape
    pn = m1_ref.shape[0]                             # P * n_items
    n_items = pn // p_obs

    # One-hot over the fused (position, item) column axis: column c belongs to
    # position p = c // n_items; row b matches iff idx[b, p] + p*n_items == c.
    # Built with one iota, (P-1) selects and one compare (all VPU, lane-dense).
    col = jax.lax.broadcasted_iota(jnp.int32, (tb, pn), 1)
    expected = jnp.broadcast_to(idx[:, 0:1], (tb, pn))
    for p in range(1, p_obs):                        # static unroll; P is small
        cand = jnp.broadcast_to(idx[:, p:p + 1] + p * n_items, (tb, pn))
        expected = jnp.where(col >= p * n_items, cand, expected)
    # NOTE: out-of-range indices silently produce an all-zero one-hot segment
    # (PyTorch nn.Embedding would raise).
    onehot = (expected == col).astype(m1_ref.dtype)  # [TB, PN] f32

    # Layer 1: gather + Linear1 fused into ONE MXU matmul (K = P*n_items).
    h1 = jnp.dot(onehot, m1_ref[...], preferred_element_type=jnp.float32)
    h1 = jnp.maximum(h1 + b1_ref[...], 0.0).astype(jnp.bfloat16)   # [TB, 128]

    h2 = jnp.dot(h1, w2_ref[...], preferred_element_type=jnp.float32) + b2_ref[...]
    h2 = jnp.maximum(h2, 0.0).astype(jnp.bfloat16)                 # [TB, 128]

    out = jnp.dot(h2, w3_ref[...], preferred_element_type=jnp.float32)
    o_ref[...] = out + b3_ref[...]                                 # [TB, out_pad] f32


def recommend_forward(x_idx, params, output_dim):
    """x_idx: int32 [batch, past_observations] item indices.

    Returns logits [batch, output_dim], matching the PyTorch forward.
    """
    m1, b1 = params["m1"], params["b1"]     # [P*n_items, 128] f32, [1, 128] f32
    w2t, b2 = params["w2t"], params["b2"]   # [128, 128] bf16,  [1, 128] f32
    w3t, b3 = params["w3t"], params["b3"]   # [128, out_pad] bf16, [1, out_pad] f32

    batch, past = x_idx.shape
    pn = m1.shape[0]
    out_pad = w3t.shape[1]

    # Pad batch to a multiple of 16 (bf16 sublane packing); pick a batch tile
    # that fills the MXU M dim once batch is large, single grid step otherwise.
    b_pad = _round_up(max(batch, 1), _SUBLANE_BF16)
    tb = min(b_pad, 128)
    b_pad = _round_up(b_pad, tb)
    if b_pad != batch:
        x_idx = jnp.pad(x_idx, ((0, b_pad - batch), (0, 0)))
    grid = (b_pad // tb,)

    flops = 2 * b_pad * (pn * _H1_PAD + _H1_PAD * _H2_PAD + _H2_PAD * out_pad)
    bytes_accessed = (x_idx.size * 4 + m1.nbytes + b1.nbytes + w2t.nbytes
                      + b2.nbytes + w3t.nbytes + b3.nbytes
                      + b_pad * out_pad * 4)

    def resident(shape):
        # Full-array block, same block index at every grid step -> stays in VMEM.
        return pl.BlockSpec(shape, lambda i, _s=shape: (0,) * len(_s))

    out = pl.pallas_call(
        _mlp_kernel,
        out_shape=jax.ShapeDtypeStruct((b_pad, out_pad), jnp.float32),
        grid_spec=pltpu.PrefetchScalarGridSpec(
            num_scalar_prefetch=0,
            grid=grid,
            in_specs=[
                pl.BlockSpec((tb, past), lambda i: (i, 0)),
                resident(m1.shape), resident(b1.shape),
                resident(w2t.shape), resident(b2.shape),
                resident(w3t.shape), resident(b3.shape),
            ],
            out_specs=pl.BlockSpec((tb, out_pad), lambda i: (i, 0)),
        ),
        compiler_params=pltpu.CompilerParams(dimension_semantics=("parallel",)),
        cost_estimate=pl.CostEstimate(flops=flops, transcendentals=0,
                                      bytes_accessed=bytes_accessed),
    )(x_idx, m1, b1, w2t, b2, w3t, b3)
    return out[:batch, :output_dim]


def init_params(key, past_observations, n_factors, output_dim):
    """Synthetic init mirroring the PyTorch module's shapes, with weights
    pre-transposed, zero-padded to lane-friendly widths, and the embedding
    table pre-multiplied into Linear1 (M = stacked emb @ W1t blocks)."""
    k_emb, k_w1, k_b1, k_w2, k_b2, k_w3 = jax.random.split(key, 6)
    in1 = n_factors * past_observations
    out_pad = _round_up(output_dim, _LANE)

    def linear_w(k, fan_in, fan_out):
        # PyTorch Linear default: U(-1/sqrt(fan_in), 1/sqrt(fan_in))
        bound = 1.0 / math.sqrt(fan_in)
        return jax.random.uniform(k, (fan_out, fan_in), jnp.float32, -bound, bound)

    emb = jax.random.normal(k_emb, (output_dim, n_factors), jnp.float32)

    w1 = linear_w(k_w1, in1, _H1)
    b1 = jax.random.uniform(k_b1, (_H1,), jnp.float32,
                            -1.0 / math.sqrt(in1), 1.0 / math.sqrt(in1))
    w2 = linear_w(k_w2, _H1, _H2)
    b2 = jax.random.uniform(k_b2, (_H2,), jnp.float32,
                            -1.0 / math.sqrt(_H1), 1.0 / math.sqrt(_H1))
    w3 = linear_w(k_w3, _H2, output_dim)
    # init.constant(self.output.bias, -log((1-pi)/pi))
    b3 = jnp.full((output_dim,), -math.log((1.0 - pi) / pi), jnp.float32)

    # Transpose to [in, out] and zero-pad (padding is numerically inert:
    # padded bias entries are 0 -> relu(0)=0, padded K rows of the next W are 0).
    w1t = jnp.zeros((in1, _H1_PAD), jnp.float32).at[:, :_H1].set(w1.T)
    w2t = jnp.zeros((_H1_PAD, _H2_PAD), jnp.float32).at[:_H1, :_H2].set(w2.T)
    w3t = jnp.zeros((_H2_PAD, out_pad), jnp.float32).at[:_H2, :output_dim].set(w3.T)
    b1p = jnp.zeros((1, _H1_PAD), jnp.float32).at[0, :_H1].set(b1)
    b2p = jnp.zeros((1, _H2_PAD), jnp.float32).at[0, :_H2].set(b2)
    b3p = jnp.zeros((1, out_pad), jnp.float32).at[0, :output_dim].set(b3)

    # Fused gather+Linear1 operand:
    #   M[p*n_items + i, :] = emb[i, :] @ W1t[p*F:(p+1)*F, :]
    # so  flat @ W1t == onehot([B, P*n_items]) @ M  exactly.
    m1 = jnp.einsum("nf,pfh->pnh", emb,
                    w1t.reshape(past_observations, n_factors, _H1_PAD),
                    precision=jax.lax.Precision.HIGHEST)
    m1 = m1.reshape(past_observations * output_dim, _H1_PAD)

    return {
        "embedding": emb,        # kept only for the pure-JAX reference below
        "w1t": w1t,              # kept only for the pure-JAX reference below
        "m1": m1, "b1": b1p,
        "w2t": w2t.astype(jnp.bfloat16), "b2": b2p,
        "w3t": w3t.astype(jnp.bfloat16), "b3": b3p,
    }


if __name__ == "__main__":
    past_observations = 8
    n_factors = 16
    output_dim = 32
    batch = 4

    key = jax.random.PRNGKey(0)
    k_params, k_x = jax.random.split(key)
    params = init_params(k_params, past_observations, n_factors, output_dim)

    x_idx = jax.random.randint(k_x, (batch, past_observations), 0, output_dim,
                               dtype=jnp.int32)

    out = recommend_forward(x_idx, params, output_dim)
    jax.block_until_ready(out)

    # Pure-JAX reference mirroring the PyTorch forward (f32 layer 1, bf16
    # operands / f32 accumulation for layers 2 & 3, like the kernel).
    f32 = jnp.float32
    flat = params["embedding"][x_idx].reshape(batch, -1)               # f32 [B, P*F]
    h = jnp.dot(flat, params["w1t"],
                precision=jax.lax.Precision.HIGHEST) + params["b1"]
    h = jnp.maximum(h, 0.0)
    h = jnp.dot(h.astype(jnp.bfloat16), params["w2t"],
                preferred_element_type=f32) + params["b2"]
    h = jnp.maximum(h, 0.0)
    ref = jnp.dot(h.astype(jnp.bfloat16), params["w3t"],
                  preferred_element_type=f32) + params["b3"]
    ref = ref[:, :output_dim]

    assert out.shape == (batch, output_dim)
    assert jnp.allclose(out, ref, atol=1e-3, rtol=1e-3), \
        float(jnp.max(jnp.abs(out - ref)))

    print("KERNEL_OK")
</pallas_src>

<mosaic_0001>
module attributes {stable_mosaic.version = 11 : i64} {
  func.func @_mlp_kernel(%arg0: i32, %arg1: memref<16x8xi32, #tpu.memory_space<vmem>>, %arg2: memref<256x128xf32, #tpu.memory_space<vmem>>, %arg3: memref<1x128xf32, #tpu.memory_space<vmem>>, %arg4: memref<128x128xbf16, #tpu.memory_space<vmem>>, %arg5: memref<1x128xf32, #tpu.memory_space<vmem>>, %arg6: memref<128x128xbf16, #tpu.memory_space<vmem>>, %arg7: memref<1x128xf32, #tpu.memory_space<vmem>>, %arg8: memref<16x128xf32, #tpu.memory_space<vmem>>) attributes {dimension_semantics = [#tpu.dimension_semantics<parallel>], iteration_bounds = array<i64: 1>, scalar_prefetch = 0 : i64, scratch_operands = 0 : i64, tpu.core_type = #tpu.core_type<tc>, window_params = [{transform_indices = @transform_0, window_bounds = array<i64: 16, 8>}, {pipeline_mode = #tpu.pipeline_mode<synchronous>, transform_indices = @transform_1, window_bounds = array<i64: 256, 128>}, {pipeline_mode = #tpu.pipeline_mode<synchronous>, transform_indices = @transform_2, window_bounds = array<i64: 1, 128>}, {pipeline_mode = #tpu.pipeline_mode<synchronous>, transform_indices = @transform_3, window_bounds = array<i64: 128, 128>}, {pipeline_mode = #tpu.pipeline_mode<synchronous>, transform_indices = @transform_4, window_bounds = array<i64: 1, 128>}, {pipeline_mode = #tpu.pipeline_mode<synchronous>, transform_indices = @transform_5, window_bounds = array<i64: 128, 128>}, {pipeline_mode = #tpu.pipeline_mode<synchronous>, transform_indices = @transform_6, window_bounds = array<i64: 1, 128>}, {transform_indices = @transform_7, window_bounds = array<i64: 16, 128>}]} {
    %c0 = arith.constant 0 : index
    %c0_0 = arith.constant 0 : index
    %0 = vector.load %arg1[%c0, %c0_0] : memref<16x8xi32, #tpu.memory_space<vmem>>, vector<16x8xi32>
    %1 = tpu.iota {dimensions = array<i32: 1>} : vector<16x256xi32>
    %2 = vector.extract_strided_slice %0 {offsets = [0, 0], sizes = [16, 1], strides = [1, 1]} : vector<16x8xi32> to vector<16x1xi32>
    %3 = vector.shape_cast %2 : vector<16x1xi32> to vector<16x1xi32>
    %4 = vector.broadcast %3 : vector<16x1xi32> to vector<16x256xi32>
    %5 = vector.extract_strided_slice %0 {offsets = [0, 1], sizes = [16, 1], strides = [1, 1]} : vector<16x8xi32> to vector<16x1xi32>
    %c32_i32 = arith.constant 32 : i32
    %6 = vector.broadcast %c32_i32 : i32 to vector<16x1xi32>
    %7 = arith.addi %5, %6 : vector<16x1xi32>
    %8 = vector.shape_cast %7 : vector<16x1xi32> to vector<16x1xi32>
    %9 = vector.broadcast %8 : vector<16x1xi32> to vector<16x256xi32>
    %c32_i32_1 = arith.constant 32 : i32
    %10 = vector.broadcast %c32_i32_1 : i32 to vector<16x256xi32>
    %11 = arith.cmpi sge, %1, %10 : vector<16x256xi32>
    %12 = arith.select %11, %9, %4 : vector<16x256xi1>, vector<16x256xi32>
    %13 = vector.extract_strided_slice %0 {offsets = [0, 2], sizes = [16, 1], strides = [1, 1]} : vector<16x8xi32> to vector<16x1xi32>
    %c64_i32 = arith.constant 64 : i32
    %14 = vector.broadcast %c64_i32 : i32 to vector<16x1xi32>
    %15 = arith.addi %13, %14 : vector<16x1xi32>
    %16 = vector.shape_cast %15 : vector<16x1xi32> to vector<16x1xi32>
    %17 = vector.broadcast %16 : vector<16x1xi32> to vector<16x256xi32>
    %c64_i32_2 = arith.constant 64 : i32
    %18 = vector.broadcast %c64_i32_2 : i32 to vector<16x256xi32>
    %19 = arith.cmpi sge, %1, %18 : vector<16x256xi32>
    %20 = arith.select %19, %17, %12 : vector<16x256xi1>, vector<16x256xi32>
    %21 = vector.extract_strided_slice %0 {offsets = [0, 3], sizes = [16, 1], strides = [1, 1]} : vector<16x8xi32> to vector<16x1xi32>
    %c96_i32 = arith.constant 96 : i32
    %22 = vector.broadcast %c96_i32 : i32 to vector<16x1xi32>
    %23 = arith.addi %21, %22 : vector<16x1xi32>
    %24 = vector.shape_cast %23 : vector<16x1xi32> to vector<16x1xi32>
    %25 = vector.broadcast %24 : vector<16x1xi32> to vector<16x256xi32>
    %c96_i32_3 = arith.constant 96 : i32
    %26 = vector.broadcast %c96_i32_3 : i32 to vector<16x256xi32>
    %27 = arith.cmpi sge, %1, %26 : vector<16x256xi32>
    %28 = arith.select %27, %25, %20 : vector<16x256xi1>, vector<16x256xi32>
    %29 = vector.extract_strided_slice %0 {offsets = [0, 4], sizes = [16, 1], strides = [1, 1]} : vector<16x8xi32> to vector<16x1xi32>
    %c128_i32 = arith.constant 128 : i32
    %30 = vector.broadcast %c128_i32 : i32 to vector<16x1xi32>
    %31 = arith.addi %29, %30 : vector<16x1xi32>
    %32 = vector.shape_cast %31 : vector<16x1xi32> to vector<16x1xi32>
    %33 = vector.broadcast %32 : vector<16x1xi32> to vector<16x256xi32>
    %c128_i32_4 = arith.constant 128 : i32
    %34 = vector.broadcast %c128_i32_4 : i32 to vector<16x256xi32>
    %35 = arith.cmpi sge, %1, %34 : vector<16x256xi32>
    %36 = arith.select %35, %33, %28 : vector<16x256xi1>, vector<16x256xi32>
    %37 = vector.extract_strided_slice %0 {offsets = [0, 5], sizes = [16, 1], strides = [1, 1]} : vector<16x8xi32> to vector<16x1xi32>
    %c160_i32 = arith.constant 160 : i32
    %38 = vector.broadcast %c160_i32 : i32 to vector<16x1xi32>
    %39 = arith.addi %37, %38 : vector<16x1xi32>
    %40 = vector.shape_cast %39 : vector<16x1xi32> to vector<16x1xi32>
    %41 = vector.broadcast %40 : vector<16x1xi32> to vector<16x256xi32>
    %c160_i32_5 = arith.constant 160 : i32
    %42 = vector.broadcast %c160_i32_5 : i32 to vector<16x256xi32>
    %43 = arith.cmpi sge, %1, %42 : vector<16x256xi32>
    %44 = arith.select %43, %41, %36 : vector<16x256xi1>, vector<16x256xi32>
    %45 = vector.extract_strided_slice %0 {offsets = [0, 6], sizes = [16, 1], strides = [1, 1]} : vector<16x8xi32> to vector<16x1xi32>
    %c192_i32 = arith.constant 192 : i32
    %46 = vector.broadcast %c192_i32 : i32 to vector<16x1xi32>
    %47 = arith.addi %45, %46 : vector<16x1xi32>
    %48 = vector.shape_cast %47 : vector<16x1xi32> to vector<16x1xi32>
    %49 = vector.broadcast %48 : vector<16x1xi32> to vector<16x256xi32>
    %c192_i32_6 = arith.constant 192 : i32
    %50 = vector.broadcast %c192_i32_6 : i32 to vector<16x256xi32>
    %51 = arith.cmpi sge, %1, %50 : vector<16x256xi32>
    %52 = arith.select %51, %49, %44 : vector<16x256xi1>, vector<16x256xi32>
    %53 = vector.extract_strided_slice %0 {offsets = [0, 7], sizes = [16, 1], strides = [1, 1]} : vector<16x8xi32> to vector<16x1xi32>
    %c224_i32 = arith.constant 224 : i32
    %54 = vector.broadcast %c224_i32 : i32 to vector<16x1xi32>
    %55 = arith.addi %53, %54 : vector<16x1xi32>
    %56 = vector.shape_cast %55 : vector<16x1xi32> to vector<16x1xi32>
    %57 = vector.broadcast %56 : vector<16x1xi32> to vector<16x256xi32>
    %c224_i32_7 = arith.constant 224 : i32
    %58 = vector.broadcast %c224_i32_7 : i32 to vector<16x256xi32>
    %59 = arith.cmpi sge, %1, %58 : vector<16x256xi32>
    %60 = arith.select %59, %57, %52 : vector<16x256xi1>, vector<16x256xi32>
    %61 = arith.cmpi eq, %60, %1 : vector<16x256xi32>
    %62 = arith.extui %61 : vector<16x256xi1> to vector<16x256xi32>
    %63 = arith.sitofp %62 : vector<16x256xi32> to vector<16x256xf32>
    %c0_8 = arith.constant 0 : index
    %c0_9 = arith.constant 0 : index
    %64 = vector.load %arg2[%c0_8, %c0_9] : memref<256x128xf32, #tpu.memory_space<vmem>>, vector<256x128xf32>
    %cst = arith.constant dense<0.000000e+00> : vector<16x128xf32>
    %65 = tpu.matmul %63, %64, %cst {dimension_numbers = #tpu.dot_dimension_numbers<[1], [0], [0], [1], [0, 0, 1, 1], [], []>} : vector<16x256xf32>, vector<256x128xf32>, vector<16x128xf32> -> vector<16x128xf32>
    %c0_10 = arith.constant 0 : index
    %c0_11 = arith.constant 0 : index
    %66 = vector.load %arg3[%c0_10, %c0_11] : memref<1x128xf32, #tpu.memory_space<vmem>>, vector<1x128xf32>
    %67 = vector.broadcast %66 : vector<1x128xf32> to vector<16x128xf32>
    %68 = arith.addf %65, %67 : vector<16x128xf32>
    %cst_12 = arith.constant 0.000000e+00 : f32
    %69 = vector.broadcast %cst_12 : f32 to vector<16x128xf32>
    %70 = arith.maximumf %68, %69 : vector<16x128xf32>
    %71 = arith.truncf %70 : vector<16x128xf32> to vector<16x128xbf16>
    %c0_13 = arith.constant 0 : index
    %c0_14 = arith.constant 0 : index
    %72 = vector.load %arg4[%c0_13, %c0_14] : memref<128x128xbf16, #tpu.memory_space<vmem>>, vector<128x128xbf16>
    %cst_15 = arith.constant dense<0.000000e+00> : vector<16x128xf32>
    %73 = tpu.matmul %71, %72, %cst_15 {dimension_numbers = #tpu.dot_dimension_numbers<[1], [0], [0], [1], [0, 0, 1, 1], [], []>} : vector<16x128xbf16>, vector<128x128xbf16>, vector<16x128xf32> -> vector<16x128xf32>
    %c0_16 = arith.constant 0 : index
    %c0_17 = arith.constant 0 : index
    %74 = vector.load %arg5[%c0_16, %c0_17] : memref<1x128xf32, #tpu.memory_space<vmem>>, vector<1x128xf32>
    %75 = vector.broadcast %74 : vector<1x128xf32> to vector<16x128xf32>
    %76 = arith.addf %73, %75 : vector<16x128xf32>
    %cst_18 = arith.constant 0.000000e+00 : f32
    %77 = vector.broadcast %cst_18 : f32 to vector<16x128xf32>
    %78 = arith.maximumf %76, %77 : vector<16x128xf32>
    %79 = arith.truncf %78 : vector<16x128xf32> to vector<16x128xbf16>
    %c0_19 = arith.constant 0 : index
    %c0_20 = arith.constant 0 : index
    %80 = vector.load %arg6[%c0_19, %c0_20] : memref<128x128xbf16, #tpu.memory_space<vmem>>, vector<128x128xbf16>
    %cst_21 = arith.constant dense<0.000000e+00> : vector<16x128xf32>
    %81 = tpu.matmul %79, %80, %cst_21 {dimension_numbers = #tpu.dot_dimension_numbers<[1], [0], [0], [1], [0, 0, 1, 1], [], []>} : vector<16x128xbf16>, vector<128x128xbf16>, vector<16x128xf32> -> vector<16x128xf32>
    %c0_22 = arith.constant 0 : index
    %c0_23 = arith.constant 0 : index
    %82 = vector.load %arg7[%c0_22, %c0_23] : memref<1x128xf32, #tpu.memory_space<vmem>>, vector<1x128xf32>
    %83 = vector.broadcast %82 : vector<1x128xf32> to vector<16x128xf32>
    %84 = arith.addf %81, %83 : vector<16x128xf32>
    %c0_24 = arith.constant 0 : index
    %c0_25 = arith.constant 0 : index
    %85 = vector.load %arg8[%c0_24, %c0_25] : memref<16x128xf32, #tpu.memory_space<vmem>>, vector<16x128xf32>
    tpu.vector_store %arg8[%c0_24, %c0_25], %84 {strides = array<i32>} : memref<16x128xf32, #tpu.memory_space<vmem>>, vector<16x128xf32>,
    return
  }
  func.func @transform_0(%arg0: i32) -> (i32, i32) {
    %c0_i32 = arith.constant 0 : i32
    %c0_i32_0 = arith.constant 0 : i32
    return %arg0, %c0_i32 : i32, i32
  }
  func.func @transform_1(%arg0: i32) -> (i32, i32) {
    %c0_i32 = arith.constant 0 : i32
    %c0_i32_0 = arith.constant 0 : i32
    %c0_i32_1 = arith.constant 0 : i32
    return %c0_i32, %c0_i32_0 : i32, i32
  }
  func.func @transform_2(%arg0: i32) -> (i32, i32) {
    %c0_i32 = arith.constant 0 : i32
    %c0_i32_0 = arith.constant 0 : i32
    %c0_i32_1 = arith.constant 0 : i32
    return %c0_i32, %c0_i32_0 : i32, i32
  }
  func.func @transform_3(%arg0: i32) -> (i32, i32) {
    %c0_i32 = arith.constant 0 : i32
    %c0_i32_0 = arith.constant 0 : i32
    %c0_i32_1 = arith.constant 0 : i32
    return %c0_i32, %c0_i32_0 : i32, i32
  }
  func.func @transform_4(%arg0: i32) -> (i32, i32) {
    %c0_i32 = arith.constant 0 : i32
    %c0_i32_0 = arith.constant 0 : i32
    %c0_i32_1 = arith.constant 0 : i32
    return %c0_i32, %c0_i32_0 : i32, i32
  }
  func.func @transform_5(%arg0: i32) -> (i32, i32) {
    %c0_i32 = arith.constant 0 : i32
    %c0_i32_0 = arith.constant 0 : i32
    %c0_i32_1 = arith.constant 0 : i32
    return %c0_i32, %c0_i32_0 : i32, i32
  }
  func.func @transform_6(%arg0: i32) -> (i32, i32) {
    %c0_i32 = arith.constant 0 : i32
    %c0_i32_0 = arith.constant 0 : i32
    %c0_i32_1 = arith.constant 0 : i32
    return %c0_i32, %c0_i32_0 : i32, i32
  }
  func.func @transform_7(%arg0: i32) -> (i32, i32) {
    %c0_i32 = arith.constant 0 : i32
    %c0_i32_0 = arith.constant 0 : i32
    return %arg0, %c0_i32 : i32, i32
  }
}

</mosaic_0001>

<llo_original>
// kernel: tpu_custom_call.1
$region0: #{tpu_custom_call.1}
  #allocation0 [shape = 'u32[]', space=smem, size = 0x4, offset = 0x4, fixed_abs, tag = 'smem constant byte address 0x4 - core index']
  #allocation1 [shape = 'u32[72,128]{1,0:T(1,128)}', space=vmem, size = 0x9000, scoped, tag = 'internal scratch']
  %s0 = inlined_call_operand.vmem [shape: s32[16,8], index: 0, kind: input, shape index: {}]
  %s1 = inlined_call_operand.hbm [shape: f32[256,128], index: 1, kind: input, shape index: {}]
  %s2 = inlined_call_operand.vmem [shape: f32[1,128], index: 2, kind: input, shape index: {}]
  %s3 = inlined_call_operand.hbm [shape: bf16[128,128], index: 3, kind: input, shape index: {}]
  %s4 = inlined_call_operand.vmem [shape: f32[1,128], index: 4, kind: input, shape index: {}]
  %s5 = inlined_call_operand.hbm [shape: bf16[128,128], index: 5, kind: input, shape index: {}]
  %s6 = inlined_call_operand.vmem [shape: f32[1,128], index: 6, kind: input, shape index: {}]
  %s7 = inlined_call_operand.hbm [shape: f32[16,128], index: 7, kind: output, shape index: {}]
  %s8 = sld [smem:[#allocation0]]
  $region50: #{tpu_custom_call.1} parent=0
    _
  %s10 = ssub.s32 1, %s8
  %s11 = scalar_select 0, %s10, %s8
  $region1: #{tpu_custom_call.1} parent=0
    #allocation2 [shape = 'u8[131072]{0}', space=vmem, size = 0x20000, scoped, tag = 'input window, operand 1, single buffered']
    #allocation3 [shape = 's32[1]{0}', space=sflag, size = 0x4, scoped, tag = 'scoped memory for tpu_custom_call.1']
    #allocation4 [shape = 's32[1]{0}', space=sflag, size = 0x4, scoped, tag = 'scoped memory for tpu_custom_call.1']
    #allocation5 [shape = 'u8[32768]{0}', space=vmem, size = 0x8000, scoped, tag = 'input window, operand 3, single buffered']
    #allocation6 [shape = 's32[1]{0}', space=sflag, size = 0x4, scoped, tag = 'scoped memory for tpu_custom_call.1']
    #allocation7 [shape = 'u8[32768]{0}', space=vmem, size = 0x8000, scoped, tag = 'input window, operand 5, single buffered']
    #allocation8 [shape = 'u8[8192]{0}', space=vmem, size = 0x2000, scoped, tag = 'output window, operand 0, single buffered']
    %12 = vsyncpa [#allocation3], 0
    %13 = vsyncpa [#allocation6], 0
    %14 = vsyncpa [#allocation4], 0
    // Predicated region
    $region2: #{tpu_custom_call.1} parent=1 // pred_check
      _
    $region3: #{tpu_custom_call.1} parent=1 // pred_check_branch
      %16 = sbr.rel (0) target = $region5
    $region4: #{tpu_custom_call.1} parent=1 // pred_region
      _
    $region5: #{tpu_custom_call.1} parent=1 // pred_fallthru
      _
    // Predicated region
    $region6: #{tpu_custom_call.1} parent=1 // pred_check
      _
    $region7: #{tpu_custom_call.1} parent=1 // pred_check_branch
      %18 = sbr.rel (0) target = $region9
    $region8: #{tpu_custom_call.1} parent=1 // pred_region
      %20 = vsyncadd [#allocation3], 0
      %s21 = sshll.u32 %s1, 4
      %s22 = int_to_ptr.hbm [resolvable:$true] %s21
      %s23 = sshll.u32 [#allocation2], 4
      %s24 = int_to_ptr.vmem [resolvable:$true] %s23
      %29 = dma.hbm_to_vmem [thread:$0]  %s22, 4096, %s24, [#allocation3], 128, 128, 8
    $region9: #{tpu_custom_call.1} parent=1 // pred_fallthru
      _
    // Predicated region
    $region10: #{tpu_custom_call.1} parent=1 // pred_check
      _
    $region11: #{tpu_custom_call.1} parent=1 // pred_check_branch
      %31 = sbr.rel (0) target = $region13
    $region12: #{tpu_custom_call.1} parent=1 // pred_region
      _
    $region13: #{tpu_custom_call.1} parent=1 // pred_fallthru
      _
    // Predicated region
    $region14: #{tpu_custom_call.1} parent=1 // pred_check
      _
    $region15: #{tpu_custom_call.1} parent=1 // pred_check_branch
      %33 = sbr.rel (0) target = $region17
    $region16: #{tpu_custom_call.1} parent=1 // pred_region
      %35 = vsyncadd [#allocation6], 0
      %s36 = sshll.u32 %s3, 4
      %s37 = int_to_ptr.hbm [resolvable:$true] %s36
      %s38 = sshll.u32 [#allocation5], 4
      %s39 = int_to_ptr.vmem [resolvable:$true] %s38
      %44 = dma.hbm_to_vmem [thread:$0]  %s37, 1024, %s39, [#allocation6], 64, 64, 4
    $region17: #{tpu_custom_call.1} parent=1 // pred_fallthru
      _
    // Predicated region
    $region18: #{tpu_custom_call.1} parent=1 // pred_check
      _
    $region19: #{tpu_custom_call.1} parent=1 // pred_check_branch
      %46 = sbr.rel (0) target = $region21
    $region20: #{tpu_custom_call.1} parent=1 // pred_region
      _
    $region21: #{tpu_custom_call.1} parent=1 // pred_fallthru
      _
    // Predicated region
    $region22: #{tpu_custom_call.1} parent=1 // pred_check
      _
    $region23: #{tpu_custom_call.1} parent=1 // pred_check_branch
      %48 = sbr.rel (0) target = $region25
    $region24: #{tpu_custom_call.1} parent=1 // pred_region
      %50 = vsyncadd [#allocation6], 0
      %s51 = sshll.u32 %s5, 4
      %s52 = int_to_ptr.hbm [resolvable:$true] %s51
      %s53 = sshll.u32 [#allocation7], 4
      %s54 = int_to_ptr.vmem [resolvable:$true] %s53
      %59 = dma.hbm_to_vmem [thread:$0]  %s52, 1024, %s54, [#allocation6], 64, 64, 4
    $region25: #{tpu_custom_call.1} parent=1 // pred_fallthru
      _
    // Predicated region
    $region26: #{tpu_custom_call.1} parent=1 // pred_check
      _
    $region27: #{tpu_custom_call.1} parent=1 // pred_check_branch
      %61 = sbr.rel (0) target = $region29
    $region28: #{tpu_custom_call.1} parent=1 // pred_region
      _
    $region29: #{tpu_custom_call.1} parent=1 // pred_fallthru
      _
    // Predicated region
    $region30: #{tpu_custom_call.1} parent=1 // pred_check
      _
    $region31: #{tpu_custom_call.1} parent=1 // pred_check_branch
      %63 = sbr.rel (0) target = $region33
    $region32: #{tpu_custom_call.1} parent=1 // pred_region
      %65 = dma.done [#allocation3], 4096
    $region33: #{tpu_custom_call.1} parent=1 // pred_fallthru
      _
    // Predicated region
    $region34: #{tpu_custom_call.1} parent=1 // pred_check
      _
    $region35: #{tpu_custom_call.1} parent=1 // pred_check_branch
      %67 = sbr.rel (0) target = $region37
    $region36: #{tpu_custom_call.1} parent=1 // pred_region
      %69 = dma.done [#allocation6], 1024
    $region37: #{tpu_custom_call.1} parent=1 // pred_fallthru
      _
    // Predicated region
    $region38: #{tpu_custom_call.1} parent=1 // pred_check
      _
    $region39: #{tpu_custom_call.1} parent=1 // pred_check_branch
      %71 = sbr.rel (0) target = $region41
    $region40: #{tpu_custom_call.1} parent=1 // pred_region
      %73 = dma.done [#allocation6], 1024
    $region41: #{tpu_custom_call.1} parent=1 // pred_fallthru
      _
    %v74 = vld [vmem:[%s0] sm:$0xff]
    %v75 = vld [vmem:[%s0 + $0x8] sm:$0xff]
    %v76 = vlaneseq
    %v77 = vand.u32 %v76, 127
    %v78 = vadd.s32 %v77, 128
    %79 = vset.pattern.permute.xlu0 0
    %80 = vperm.xlu0 %79, %v74
    %v81 = vpop.permute.xlu0 %80
    %82 = vset.pattern.permute.xlu0 0
    %83 = vperm.xlu0 %82, %v75
    %v84 = vpop.permute.xlu0 %83
    %v85 = vadd.s32 %v74, 32
    %v86 = vadd.s32 %v75, 32
    %87 = vset.pattern.permute.xlu0 1
    %88 = vperm.xlu0 %87, %v85
    %v89 = vpop.permute.xlu0 %88
    %90 = vset.pattern.permute.xlu0 1
    %91 = vperm.xlu0 %90, %v86
    %v92 = vpop.permute.xlu0 %91
    %vm93 = vcmp.ge.s32.totalorder %v77, 32
    %vm94 = vcmp.ge.s32.totalorder %v78, 32
    %v95 = vsel %vm93, %v89, %v81
    %v96 = vsel %vm94, %v89, %v81
    %v97 = vsel %vm93, %v92, %v84
    %v98 = vsel %vm94, %v92, %v84
    %v99 = vadd.s32 %v74, 64
    %v100 = vadd.s32 %v75, 64
    %101 = vset.pattern.permute.xlu0 2
    %102 = vperm.xlu0 %101, %v99
    %v103 = vpop.permute.xlu0 %102
    %104 = vset.pattern.permute.xlu0 2
    %105 = vperm.xlu0 %104, %v100
    %v106 = vpop.permute.xlu0 %105
    %vm107 = vcmp.ge.s32.totalorder %v77, 64
    %vm108 = vcmp.ge.s32.totalorder %v78, 64
    %v109 = vsel %vm107, %v103, %v95
    %v110 = vsel %vm108, %v103, %v96
    %v111 = vsel %vm107, %v106, %v97
    %v112 = vsel %vm108, %v106, %v98
    %v113 = vadd.s32 %v74, 96
    %v114 = vadd.s32 %v75, 96
    %115 = vset.pattern.permute.xlu0 3
    %116 = vperm.xlu0 %115, %v113
    %v117 = vpop.permute.xlu0 %116
    %118 = vset.pattern.permute.xlu0 3
    %119 = vperm.xlu0 %118, %v114
    %v120 = vpop.permute.xlu0 %119
    %vm121 = vcmp.ge.s32.totalorder %v77, 96
    %vm122 = vcmp.ge.s32.totalorder %v78, 96
    %v123 = vsel %vm121, %v117, %v109
    %v124 = vsel %vm122, %v117, %v110
    %v125 = vsel %vm121, %v120, %v111
    %v126 = vsel %vm122, %v120, %v112
    %v127 = vadd.s32 %v74, 128
    %v128 = vadd.s32 %v75, 128
    %129 = vset.pattern.permute.xlu0 4
    %130 = vperm.xlu0 %129, %v127
    %v131 = vpop.permute.xlu0 %130
    %132 = vset.pattern.permute.xlu0 4
    %133 = vperm.xlu0 %132, %v128
    %v134 = vpop.permute.xlu0 %133
    %vm135 = vcmp.ge.s32.totalorder %v77, 128
    %vm136 = vcmp.ge.s32.totalorder %v78, 128
    %v137 = vsel %vm135, %v131, %v123
    %v138 = vsel %vm136, %v131, %v124
    %v139 = vsel %vm135, %v134, %v125
    %v140 = vsel %vm136, %v134, %v126
    %v141 = vadd.s32 %v74, 160
    %v142 = vadd.s32 %v75, 160
    %143 = vset.pattern.permute.xlu0 5
    %144 = vperm.xlu0 %143, %v141
    %v145 = vpop.permute.xlu0 %144
    %146 = vset.pattern.permute.xlu0 5
    %147 = vperm.xlu0 %146, %v142
    %v148 = vpop.permute.xlu0 %147
    %vm149 = vcmp.ge.s32.totalorder %v77, 160
    %vm150 = vcmp.ge.s32.totalorder %v78, 160
    %v151 = vsel %vm149, %v145, %v137
    %v152 = vsel %vm150, %v145, %v138
    %v153 = vsel %vm149, %v148, %v139
    %v154 = vsel %vm150, %v148, %v140
    %v155 = vadd.s32 %v74, 192
    %v156 = vadd.s32 %v75, 192
    %157 = vset.pattern.permute.xlu0 6
    %158 = vperm.xlu0 %157, %v155
    %v159 = vpop.permute.xlu0 %158
    %160 = vset.pattern.permute.xlu0 6
    %161 = vperm.xlu0 %160, %v156
    %v162 = vpop.permute.xlu0 %161
    %vm163 = vcmp.ge.s32.totalorder %v77, 192
    %vm164 = vcmp.ge.s32.totalorder %v78, 192
    %v165 = vsel %vm163, %v159, %v151
    %v166 = vsel %vm164, %v159, %v152
    %v167 = vsel %vm163, %v162, %v153
    %v168 = vsel %vm164, %v162, %v154
    %v169 = vadd.s32 %v74, 224
    %v170 = vadd.s32 %v75, 224
    %171 = vset.pattern.permute.xlu0 7
    %172 = vperm.xlu0 %171, %v169
    %v173 = vpop.permute.xlu0 %172
    %174 = vset.pattern.permute.xlu0 7
    %175 = vperm.xlu0 %174, %v170
    %v176 = vpop.permute.xlu0 %175
    %vm177 = vcmp.ge.s32.totalorder %v77, 224
    %vm178 = vcmp.ge.s32.totalorder %v78, 224
    %v179 = vsel %vm177, %v173, %v165
    %v180 = vsel %vm178, %v173, %v166
    %v181 = vsel %vm177, %v176, %v167
    %v182 = vsel %vm178, %v176, %v168
    %vm183 = vcmp.eq.s32.totalorder %v179, %v77
    %vm184 = vcmp.eq.s32.totalorder %v180, %v78
    %vm185 = vcmp.eq.s32.totalorder %v181, %v77
    %vm186 = vcmp.eq.s32.totalorder %v182, %v78
    %v187 = vsel %vm183, 1, 0
    %v188 = vsel %vm184, 1, 0
    %v189 = vsel %vm185, 1, 0
    %v190 = vsel %vm186, 1, 0
    %v191 = vcvt.s32.f32 %v187
    %v192 = vcvt.s32.f32 %v188
    %v193 = vcvt.s32.f32 %v189
    %v194 = vcvt.s32.f32 %v190
    %v195 = vld [vmem:[#allocation2] sm:$0xff]
    %v196 = vld [vmem:[#allocation2 + $0x8] sm:$0xff]
    %v197 = vld [vmem:[#allocation2 + $0x10] sm:$0xff]
    %v198 = vld [vmem:[#allocation2 + $0x18] sm:$0xff]
    %v199 = vld [vmem:[#allocation2 + $0x20] sm:$0xff]
    %v200 = vld [vmem:[#allocation2 + $0x28] sm:$0xff]
    %v201 = vld [vmem:[#allocation2 + $0x30] sm:$0xff]
    %v202 = vld [vmem:[#allocation2 + $0x38] sm:$0xff]
    %v203 = vld [vmem:[#allocation2 + $0x40] sm:$0xff]
    %v204 = vld [vmem:[#allocation2 + $0x48] sm:$0xff]
    %v205 = vld [vmem:[#allocation2 + $0x50] sm:$0xff]
    %v206 = vld [vmem:[#allocation2 + $0x58] sm:$0xff]
    %v207 = vld [vmem:[#allocation2 + $0x60] sm:$0xff]
    %v208 = vld [vmem:[#allocation2 + $0x68] sm:$0xff]
    %v209 = vld [vmem:[#allocation2 + $0x70] sm:$0xff]
    %v210 = vld [vmem:[#allocation2 + $0x78] sm:$0xff]
    %v211 = vld [vmem:[#allocation2 + $0x80] sm:$0xff]
    %v212 = vld [vmem:[#allocation2 + $0x88] sm:$0xff]
    %v213 = vld [vmem:[#allocation2 + $0x90] sm:$0xff]
    %v214 = vld [vmem:[#allocation2 + $0x98] sm:$0xff]
    %v215 = vld [vmem:[#allocation2 + $0xa0] sm:$0xff]
    %v216 = vld [vmem:[#allocation2 + $0xa8] sm:$0xff]
    %v217 = vld [vmem:[#allocation2 + $0xb0] sm:$0xff]
    %v218 = vld [vmem:[#allocation2 + $0xb8] sm:$0xff]
    %v219 = vld [vmem:[#allocation2 + $0xc0] sm:$0xff]
    %v220 = vld [vmem:[#allocation2 + $0xc8] sm:$0xff]
    %v221 = vld [vmem:[#allocation2 + $0xd0] sm:$0xff]
    %v222 = vld [vmem:[#allocation2 + $0xd8] sm:$0xff]
    %v223 = vld [vmem:[#allocation2 + $0xe0] sm:$0xff]
    %v224 = vld [vmem:[#allocation2 + $0xe8] sm:$0xff]
    %v225 = vld [vmem:[#allocation2 + $0xf0] sm:$0xff]
    %v226 = vld [vmem:[#allocation2 + $0xf8] sm:$0xff]
    %v227 = vld [vmem:[%s2] sm:$0x1]
    %v229 = vperm.slane %v227, 0
    %231 = vmatpush.msra.mxu0 %v210
    %232 = vmatpush.msra.mxu0 %v209
    %233 = vmatpush.msra.mxu0 %v208
    %234 = vmatpush.msra.mxu0 %v207
    %235 = vmatpush.msra.mxu0 %v206
    %236 = vmatpush.msra.mxu0 %v205
    %237 = vmatpush.msra.mxu0 %v204
    %238 = vmatpush.msra.mxu0 %v203
    %239 = vmatpush.msra.mxu0 %v202
    %240 = vmatpush.msra.mxu0 %v201
    %241 = vmatpush.msra.mxu0 %v200
    %242 = vmatpush.msra.mxu0 %v199
    %243 = vmatpush.msra.mxu0 %v198
    %244 = vmatpush.msra.mxu0 %v197
    %245 = vmatpush.msra.mxu0 %v196
    %246 = vmatpush.msra.mxu0 %v195
    %247 = vmatmul.f32.gmra.mxu0 %v191
    %v248 = vpop.f32.mrf.mxu0
    %v249 = vadd.f32 %v229, %v248
    %250 = vmatmul.f32.gmra.mxu0 %v193
    %v251 = vpop.f32.mrf.mxu0
    %v252 = vadd.f32 %v229, %v251
    %253 = vdwg.mxu0
    %254 = vmatpush.msra.mxu0 %v226
    %255 = vmatpush.msra.mxu0 %v225
    %256 = vmatpush.msra.mxu0 %v224
    %257 = vmatpush.msra.mxu0 %v223
    %258 = vmatpush.msra.mxu0 %v222
    %259 = vmatpush.msra.mxu0 %v221
    %260 = vmatpush.msra.mxu0 %v220
    %261 = vmatpush.msra.mxu0 %v219
    %262 = vmatpush.msra.mxu0 %v218
    %263 = vmatpush.msra.mxu0 %v217
    %264 = vmatpush.msra.mxu0 %v216
    %265 = vmatpush.msra.mxu0 %v215
    %266 = vmatpush.msra.mxu0 %v214
    %267 = vmatpush.msra.mxu0 %v213
    %268 = vmatpush.msra.mxu0 %v212
    %269 = vmatpush.msra.mxu0 %v211
    %270 = vmatmul.f32.gmra.mxu0 %v192
    %v271 = vpop.f32.mrf.mxu0
    %v272 = vadd.f32 %v249, %v271
    %273 = vmatmul.f32.gmra.mxu0 %v194
    %v274 = vpop.f32.mrf.mxu0
    %v275 = vadd.f32 %v252, %v274
    %276 = vdwg.mxu0
    %v277 = vmax.f32 %v272, 0.0
    %v278 = vmax.f32 %v275, 0.0
    %v279 = vpack.c.bf16 %v278, %v277
    %v280 = vld [vmem:[#allocation5] sm:$0xf]
    %v281 = vld [vmem:[#allocation5 + $0x4] sm:$0xf]
    %v282 = vld [vmem:[#allocation5 + $0x8] sm:$0xf]
    %v283 = vld [vmem:[#allocation5 + $0xc] sm:$0xf]
    %v284 = vld [vmem:[#allocation5 + $0x10] sm:$0xf]
    %v285 = vld [vmem:[#allocation5 + $0x14] sm:$0xf]
    %v286 = vld [vmem:[#allocation5 + $0x18] sm:$0xf]
    %v287 = vld [vmem:[#allocation5 + $0x1c] sm:$0xf]
    %v288 = vld [vmem:[#allocation5 + $0x20] sm:$0xf]
    %v289 = vld [vmem:[#allocation5 + $0x24] sm:$0xf]
    %v290 = vld [vmem:[#allocation5 + $0x28] sm:$0xf]
    %v291 = vld [vmem:[#allocation5 + $0x2c] sm:$0xf]
    %v292 = vld [vmem:[#allocation5 + $0x30] sm:$0xf]
    %v293 = vld [vmem:[#allocation5 + $0x34] sm:$0xf]
    %v294 = vld [vmem:[#allocation5 + $0x38] sm:$0xf]
    %v295 = vld [vmem:[#allocation5 + $0x3c] sm:$0xf]
    %v296 = vld [vmem:[%s4] sm:$0x1]
    %v298 = vperm.slane %v296, 0
    %v316 = vunpack.c.l.b16 %v280
    %v317 = vunpack.c.l.b16 %v281
    %v318 = vunpack.c.l.b16 %v282
    %v319 = vunpack.c.l.b16 %v283
    %v320 = vunpack.c.l.b16 %v284
    %v321 = vunpack.c.l.b16 %v285
    %v322 = vunpack.c.l.b16 %v286
    %v323 = vunpack.c.l.b16 %v287
    %v324 = vunpack.c.l.b16 %v288
    %v325 = vunpack.c.l.b16 %v289
    %v326 = vunpack.c.l.b16 %v290
    %v327 = vunpack.c.l.b16 %v291
    %v328 = vunpack.c.l.b16 %v292
    %v329 = vunpack.c.l.b16 %v293
    %v330 = vunpack.c.l.b16 %v294
    %v331 = vunpack.c.l.b16 %v295
    %v332 = vpack.c.b16 %v317, %v316
    %v333 = vpack.c.b16 %v319, %v318
    %v334 = vpack.c.b16 %v321, %v320
    %v335 = vpack.c.b16 %v323, %v322
    %v336 = vpack.c.b16 %v325, %v324
    %v337 = vpack.c.b16 %v327, %v326
    %v338 = vpack.c.b16 %v329, %v328
    %v339 = vpack.c.b16 %v331, %v330
    %348 = vmatpush.bf16.msra.mxu0 %v339
    %349 = vmatpush.bf16.msra.mxu0 %v338
    %350 = vmatpush.bf16.msra.mxu0 %v337
    %351 = vmatpush.bf16.msra.mxu0 %v336
    %352 = vmatpush.bf16.msra.mxu0 %v335
    %353 = vmatpush.bf16.msra.mxu0 %v334
    %354 = vmatpush.bf16.msra.mxu0 %v333
    %355 = vmatpush.bf16.msra.mxu0 %v332
    %356 = vmatmul.bf16.gmra.mxu0 %v279
    %v357 = vpop.f32.mrf.mxu0
    %v358 = vadd.f32 %v298, %v357
    %v359 = vpop.f32.mrf.mxu0
    %v360 = vadd.f32 %v298, %v359
    %361 = vdwg.mxu0
    %v362 = vmax.f32 %v358, 0.0
    %v363 = vmax.f32 %v360, 0.0
    %v364 = vpack.c.bf16 %v363, %v362
    %v365 = vld [vmem:[#allocation7] sm:$0xf]
    %v366 = vld [vmem:[#allocation7 + $0x4] sm:$0xf]
    %v367 = vld [vmem:[#allocation7 + $0x8] sm:$0xf]
    %v368 = vld [vmem:[#allocation7 + $0xc] sm:$0xf]
    %v369 = vld [vmem:[#allocation7 + $0x10] sm:$0xf]
    %v370 = vld [vmem:[#allocation7 + $0x14] sm:$0xf]
    %v371 = vld [vmem:[#allocation7 + $0x18] sm:$0xf]
    %v372 = vld [vmem:[#allocation7 + $0x1c] sm:$0xf]
    %v373 = vld [vmem:[#allocation7 + $0x20] sm:$0xf]
    %v374 = vld [vmem:[#allocation7 + $0x24] sm:$0xf]
    %v375 = vld [vmem:[#allocation7 + $0x28] sm:$0xf]
    %v376 = vld [vmem:[#allocation7 + $0x2c] sm:$0xf]
    %v377 = vld [vmem:[#allocation7 + $0x30] sm:$0xf]
    %v378 = vld [vmem:[#allocation7 + $0x34] sm:$0xf]
    %v379 = vld [vmem:[#allocation7 + $0x38] sm:$0xf]
    %v380 = vld [vmem:[#allocation7 + $0x3c] sm:$0xf]
    %v381 = vld [vmem:[%s6] sm:$0x1]
    %v383 = vperm.slane %v381, 0
    %v401 = vunpack.c.l.b16 %v365
    %v402 = vunpack.c.l.b16 %v366
    %v403 = vunpack.c.l.b16 %v367
    %v404 = vunpack.c.l.b16 %v368
    %v405 = vunpack.c.l.b16 %v369
    %v406 = vunpack.c.l.b16 %v370
    %v407 = vunpack.c.l.b16 %v371
    %v408 = vunpack.c.l.b16 %v372
    %v409 = vunpack.c.l.b16 %v373
    %v410 = vunpack.c.l.b16 %v374
    %v411 = vunpack.c.l.b16 %v375
    %v412 = vunpack.c.l.b16 %v376
    %v413 = vunpack.c.l.b16 %v377
    %v414 = vunpack.c.l.b16 %v378
    %v415 = vunpack.c.l.b16 %v379
    %v416 = vunpack.c.l.b16 %v380
    %v417 = vpack.c.b16 %v402, %v401
    %v418 = vpack.c.b16 %v404, %v403
    %v419 = vpack.c.b16 %v406, %v405
    %v420 = vpack.c.b16 %v408, %v407
    %v421 = vpack.c.b16 %v410, %v409
    %v422 = vpack.c.b16 %v412, %v411
    %v423 = vpack.c.b16 %v414, %v413
    %v424 = vpack.c.b16 %v416, %v415
    %433 = vmatpush.bf16.msra.mxu0 %v424
    %434 = vmatpush.bf16.msra.mxu0 %v423
    %435 = vmatpush.bf16.msra.mxu0 %v422
    %436 = vmatpush.bf16.msra.mxu0 %v421
    %437 = vmatpush.bf16.msra.mxu0 %v420
    %438 = vmatpush.bf16.msra.mxu0 %v419
    %439 = vmatpush.bf16.msra.mxu0 %v418
    %440 = vmatpush.bf16.msra.mxu0 %v417
    %441 = vmatmul.bf16.gmra.mxu0 %v364
    %v442 = vpop.f32.mrf.mxu0
    %v443 = vadd.f32 %v383, %v442
    %v444 = vpop.f32.mrf.mxu0
    %v445 = vadd.f32 %v383, %v444
    %446 = vdwg.mxu0
    %447 = vst [vmem:[#allocation8] sm:$0xff] %v443
    %448 = vst [vmem:[#allocation8 + $0x8] sm:$0xff] %v445
    // Predicated region
    $region42: #{tpu_custom_call.1} parent=1 // pred_check
      _
    $region43: #{tpu_custom_call.1} parent=1 // pred_check_branch
      %450 = sbr.rel (0) target = $region45
    $region44: #{tpu_custom_call.1} parent=1 // pred_region
      %452 = vsyncadd [#allocation4], 0
      %s453 = sshll.u32 [#allocation8], 4
      %s454 = int_to_ptr.vmem [resolvable:$true] %s453
      %s455 = sshll.u32 %s7, 4
      %s456 = int_to_ptr.hbm [resolvable:$true] %s455
      %461 = dma.vmem_to_hbm [thread:$0]  %s454, 256, %s456, [#allocation4], 128, 128, 8
    $region45: #{tpu_custom_call.1} parent=1 // pred_fallthru
      _
    // Predicated region
    $region46: #{tpu_custom_call.1} parent=1 // pred_check
      _
    $region47: #{tpu_custom_call.1} parent=1 // pred_check_branch
      %463 = sbr.rel (0) target = $region49
    $region48: #{tpu_custom_call.1} parent=1 // pred_region
      %465 = dma.done [#allocation4], 256
    $region49: #{tpu_custom_call.1} parent=1 // pred_fallthru
      _
    %466 = vsyncpa [#allocation3], 1
    %467 = vsyncpa [#allocation6], 1
    %468 = vsyncpa [#allocation4], 1

</llo_original>
